<compile_context>
chip_gen: v7x
topology: tpu7x:2x2x1
jax: 0.10.0
libtpu: 0.0.40
codegen_flags: <defaults>
</compile_context>

<pallas_src>
import jax
import jax.numpy as jnp
from jax.experimental import pallas as pl
from jax.experimental.pallas import tpu as pltpu


def _round_up(x, m):
    return ((x + m - 1) // m) * m


def residual_add_kernel(x_ref, w_ref, b_ref, o_ref):
    # x_ref: (TM, D) input-dtype tile (pipelined)
    # w_ref: (D, D)  bf16, VMEM-resident across the grid
    # b_ref: (1, D)  f32,  VMEM-resident across the grid
    # o_ref: (TM, D) output tile
    x = x_ref[...]
    # MXU path: bf16 x bf16 -> f32 accumulate.
    fn_out = jnp.dot(x.astype(w_ref.dtype), w_ref[...],
                     preferred_element_type=jnp.float32)
    fn_out = fn_out + b_ref[...]                 # (1, D) broadcast; VPU slot
    # Residual add in f32 against the original x, then cast to output dtype.
    o_ref[...] = (x.astype(jnp.float32) + fn_out).astype(o_ref.dtype)


def residual_add(x, w, b, *, tm=512, use_bf16_matmul=True, donate_input=False):
    """out = x + (x @ w + b).  x: (B, S, D), w: (D, D), b: (D,)."""
    B, S, D = x.shape
    M = B * S

    x2d = x.reshape(M, D)
    b2d = b.reshape(1, D).astype(jnp.float32)
    w_mx = w.astype(jnp.bfloat16) if use_bf16_matmul else w

    # Tile the token dim: TM a multiple of 8 (sublane); M padded up to a
    # multiple of TM so every block satisfies the (8, 128) tiling rule.
    m8 = _round_up(M, 8)
    tm = max(8, (min(int(tm), m8) // 8) * 8)
    mp = _round_up(M, tm)
    if mp != M:
        x2d = jnp.pad(x2d, ((0, mp - M), (0, 0)))

    grid = (mp // tm,)
    x_itemsize = jnp.dtype(x.dtype).itemsize
    cost = pl.CostEstimate(
        flops=2 * mp * D * D,
        transcendentals=0,
        bytes_accessed=(mp * D * x_itemsize                        # x in
                        + mp * D * x_itemsize                      # out
                        + D * D * jnp.dtype(w_mx.dtype).itemsize   # W (resident)
                        + D * 4),                                  # b
    )

    out2d = pl.pallas_call(
        residual_add_kernel,
        out_shape=jax.ShapeDtypeStruct((mp, D), x.dtype),
        grid_spec=pltpu.PrefetchScalarGridSpec(
            num_scalar_prefetch=0,
            grid=grid,
            in_specs=[
                pl.BlockSpec((tm, D), lambda i: (i, 0)),   # x tile, pipelined
                pl.BlockSpec((D, D), lambda i: (0, 0)),    # W: VMEM-resident
                pl.BlockSpec((1, D), lambda i: (0, 0)),    # b: VMEM-resident
            ],
            out_specs=pl.BlockSpec((tm, D), lambda i: (i, 0)),
        ),
        compiler_params=pltpu.CompilerParams(
            # Independent output tiles -> megacore sharding on v7x.
            dimension_semantics=("parallel",),
        ),
        cost_estimate=cost,
        input_output_aliases={0: 0} if donate_input else {},
    )(x2d, w_mx, b2d)

    if mp != M:
        out2d = out2d[:M]
    return out2d.reshape(B, S, D)


if __name__ == "__main__":
    # Small-but-lane-friendly ViT-like shapes: batch=2, seq=100 tokens,
    # hidden=128 (multiple of 128 -> lane-dense output stores; seq is
    # deliberately not a multiple of the tile to exercise the padding path).
    B, S, D = 2, 100, 128
    key = jax.random.PRNGKey(0)
    kx, kw, kb = jax.random.split(key, 3)

    x = jax.random.normal(kx, (B, S, D), dtype=jnp.float32)
    # Deterministic parameter init for fn = Linear(D, D).
    w = jax.random.normal(kw, (D, D), dtype=jnp.float32) * (1.0 / jnp.sqrt(D))
    b = jax.random.normal(kb, (D,), dtype=jnp.float32) * 0.01

    # tm=128 -> grid=(2,): exercises multi-block pipelining + M padding.
    out = residual_add(x, w, b, tm=128)
    jax.block_until_ready(out)

    # Reference (plain JAX) with the same bf16-matmul / f32-accumulate recipe.
    x2 = x.reshape(B * S, D)
    ref2 = x2 + (jnp.dot(x2.astype(jnp.bfloat16), w.astype(jnp.bfloat16),
                         preferred_element_type=jnp.float32) + b)
    ref = ref2.reshape(B, S, D)

    assert out.shape == (B, S, D)
    assert jnp.allclose(out, ref, atol=1e-3, rtol=1e-3), "mismatch vs reference"

    # TODO(synk): `fn` in ResidualAdd is an arbitrary submodule; only a Linear
    # instantiation of fn is fused here.
    print("KERNEL_OK")
</pallas_src>

<mosaic_0001>
module attributes {stable_mosaic.version = 11 : i64} {
  func.func @residual_add_kernel(%arg0: i32, %arg1: memref<128x128xf32, #tpu.memory_space<vmem>>, %arg2: memref<128x128xbf16, #tpu.memory_space<vmem>>, %arg3: memref<1x128xf32, #tpu.memory_space<vmem>>, %arg4: memref<128x128xf32, #tpu.memory_space<vmem>>) attributes {dimension_semantics = [#tpu.dimension_semantics<parallel>], iteration_bounds = array<i64: 2>, scalar_prefetch = 0 : i64, scratch_operands = 0 : i64, tpu.core_type = #tpu.core_type<tc>, window_params = [{transform_indices = @transform_0, window_bounds = array<i64: 128, 128>}, {pipeline_mode = #tpu.pipeline_mode<synchronous>, transform_indices = @transform_1, window_bounds = array<i64: 128, 128>}, {pipeline_mode = #tpu.pipeline_mode<synchronous>, transform_indices = @transform_2, window_bounds = array<i64: 1, 128>}, {transform_indices = @transform_3, window_bounds = array<i64: 128, 128>}]} {
    %c0 = arith.constant 0 : index
    %c0_0 = arith.constant 0 : index
    %0 = vector.load %arg1[%c0, %c0_0] : memref<128x128xf32, #tpu.memory_space<vmem>>, vector<128x128xf32>
    %1 = arith.truncf %0 : vector<128x128xf32> to vector<128x128xbf16>
    %c0_1 = arith.constant 0 : index
    %c0_2 = arith.constant 0 : index
    %2 = vector.load %arg2[%c0_1, %c0_2] : memref<128x128xbf16, #tpu.memory_space<vmem>>, vector<128x128xbf16>
    %cst = arith.constant dense<0.000000e+00> : vector<128x128xf32>
    %3 = tpu.matmul %1, %2, %cst {dimension_numbers = #tpu.dot_dimension_numbers<[1], [0], [0], [1], [0, 0, 1, 1], [], []>} : vector<128x128xbf16>, vector<128x128xbf16>, vector<128x128xf32> -> vector<128x128xf32>
    %c0_3 = arith.constant 0 : index
    %c0_4 = arith.constant 0 : index
    %4 = vector.load %arg3[%c0_3, %c0_4] : memref<1x128xf32, #tpu.memory_space<vmem>>, vector<1x128xf32>
    %5 = vector.broadcast %4 : vector<1x128xf32> to vector<128x128xf32>
    %6 = arith.addf %3, %5 : vector<128x128xf32>
    %7 = arith.addf %0, %6 : vector<128x128xf32>
    %c0_5 = arith.constant 0 : index
    %c0_6 = arith.constant 0 : index
    %8 = vector.load %arg4[%c0_5, %c0_6] : memref<128x128xf32, #tpu.memory_space<vmem>>, vector<128x128xf32>
    tpu.vector_store %arg4[%c0_5, %c0_6], %7 {strides = array<i32>} : memref<128x128xf32, #tpu.memory_space<vmem>>, vector<128x128xf32>,
    return
  }
  func.func @transform_0(%arg0: i32) -> (i32, i32) {
    %c0_i32 = arith.constant 0 : i32
    %c0_i32_0 = arith.constant 0 : i32
    return %arg0, %c0_i32 : i32, i32
  }
  func.func @transform_1(%arg0: i32) -> (i32, i32) {
    %c0_i32 = arith.constant 0 : i32
    %c0_i32_0 = arith.constant 0 : i32
    %c0_i32_1 = arith.constant 0 : i32
    return %c0_i32, %c0_i32_0 : i32, i32
  }
  func.func @transform_2(%arg0: i32) -> (i32, i32) {
    %c0_i32 = arith.constant 0 : i32
    %c0_i32_0 = arith.constant 0 : i32
    %c0_i32_1 = arith.constant 0 : i32
    return %c0_i32, %c0_i32_0 : i32, i32
  }
  func.func @transform_3(%arg0: i32) -> (i32, i32) {
    %c0_i32 = arith.constant 0 : i32
    %c0_i32_0 = arith.constant 0 : i32
    return %arg0, %c0_i32 : i32, i32
  }
}

</mosaic_0001>

<llo_original>
// kernel: tpu_custom_call.1
$region0: #{tpu_custom_call.1}
  #allocation0 [shape = 'u32[]', space=smem, size = 0x4, offset = 0x4, fixed_abs, tag = 'smem constant byte address 0x4 - core index']
  #allocation1 [shape = 'u32[144,128]{1,0:T(1,128)}', space=vmem, size = 0x12000, scoped, tag = 'internal scratch']
  %s0 = inlined_call_operand.hbm [shape: f32[256,128], index: 0, kind: input, shape index: {}]
  %s1 = inlined_call_operand.hbm [shape: bf16[128,128], index: 1, kind: input, shape index: {}]
  %s2 = inlined_call_operand.vmem [shape: f32[1,128], index: 2, kind: input, shape index: {}]
  %s3 = inlined_call_operand.hbm [shape: f32[256,128], index: 3, kind: output, shape index: {}]
  %s4 = sld [smem:[#allocation0]]
  $region53: #{tpu_custom_call.1} parent=0
    _
  %s6 = ssub.s32 1, %s4
  %s7 = scalar_select 0, %s6, %s4
  $region1: #{tpu_custom_call.1} parent=0
    #allocation2 [shape = 'u8[131072]{0}', space=vmem, size = 0x20000, scoped, tag = 'input window, operand 0']
    #allocation3 [shape = 's32[2]{0}', space=sflag, size = 0x8, scoped, tag = 'scoped memory for tpu_custom_call.1']
    #allocation4 [shape = 's32[2]{0}', space=sflag, size = 0x8, scoped, tag = 'scoped memory for tpu_custom_call.1']
    #allocation5 [shape = 'u8[32768]{0}', space=vmem, size = 0x8000, scoped, tag = 'input window, operand 1, single buffered']
    #allocation6 [shape = 's32[1]{0}', space=sflag, size = 0x4, scoped, tag = 'scoped memory for tpu_custom_call.1']
    #allocation7 [shape = 'u8[131072]{0}', space=vmem, size = 0x20000, scoped, tag = 'output window, operand 0']
    %8 = vsyncpa [#allocation3], 0
    %s9 = scalar_lea.sflag [#allocation3], 1
    %10 = vsyncpa %s9, 0
    %11 = vsyncpa [#allocation6], 0
    %12 = vsyncpa [#allocation4], 0
    %s13 = scalar_lea.sflag [#allocation4], 1
    %14 = vsyncpa %s13, 0
    loop: start=0, step=1, limit=4
    $region2: #{tpu_custom_call.1} parent=1 // loop_pre_header
      _
    $region3: #{tpu_custom_call.1} parent=1 // loop_header
      %s16 = sphi 0, %s20
      %p17 = scmp.ge.s32.totalorder %s16, 4
      %s26 = sphi 0, %s28
      %s29 = sphi 0, %s26
      %s30 = sphi 0, %s29
      %s46 = sphi 0, %s30
      %s50 = sphi 0, %s50
      %s52 = sphi 0, %s50
      %s53 = sphi 0, %s52
      %s67 = sphi 0, %s53
      %s71 = sphi 0, %s71
      %s73 = sphi 0, %s71
      %s74 = sphi 0, %s73
      %s88 = sphi 0, %s74
      %s94 = sphi 0, %s96
      %s97 = sphi 0, %s94
      %s98 = sphi 0, %s97
      %s114 = sphi 0, %s98
    $region4: #{tpu_custom_call.1} parent=1 // loop_header_branch
      %19 = sbr.rel (%p17) target = $region8
    $region5: #{tpu_custom_call.1} parent=1 // loop_body
      %s21 = ssub.s32 %s16, 1
      %s22 = ssub.s32 %s16, 2
      %s23 = sadd.s32 %s16, 1
      %s24 = ssub.s32 %s16, %s23
      %p25 = scmp.eq.s32.totalorder %s24, 0
      %s27 = sadd.s32 %s26, 1
      %s28 = scalar_select %p25, %s26, %s27
      %p31 = pneg %p25
      %p32 = scmp.eq.s32.totalorder %s16, 1
      %p33 = por %p31, %p32
      %p34 = scmp.ne.s32.totalorder %s26, %s29
      %p35 = scmp.eq.s32.totalorder %s16, 0
      %p36 = por %p34, %p35
      %p37 = scmp.ne.s32.totalorder %s26, %s29
      %p38 = scmp.eq.s32.totalorder %s21, 1
      %p39 = por %p37, %p38
      %p40 = scmp.ne.s32.totalorder %s29, %s30
      %p41 = scmp.eq.s32.totalorder %s21, 0
      %p42 = por %p40, %p41
      %p43 = scmp.ne.s32.totalorder %s29, %s30
      %p44 = scmp.eq.s32.totalorder %s22, 1
      %p45 = por %p43, %p44
      %p47 = scmp.ne.s32.totalorder %s30, %s46
      %p48 = scmp.eq.s32.totalorder %s22, 0
      %p49 = por %p47, %p48
      %s51 = sadd.s32 %s50, 1
      %p54 = scmp.eq.s32.totalorder %s16, 1
      %p55 = scmp.ne.s32.totalorder %s50, %s52
      %p56 = scmp.eq.s32.totalorder %s16, 0
      %p57 = por %p55, %p56
      %p58 = scmp.ne.s32.totalorder %s50, %s52
      %p59 = scmp.eq.s32.totalorder %s21, 1
      %p60 = por %p58, %p59
      %p61 = scmp.ne.s32.totalorder %s52, %s53
      %p62 = scmp.eq.s32.totalorder %s21, 0
      %p63 = por %p61, %p62
      %p64 = scmp.ne.s32.totalorder %s52, %s53
      %p65 = scmp.eq.s32.totalorder %s22, 1
      %p66 = por %p64, %p65
      %p68 = scmp.ne.s32.totalorder %s53, %s67
      %p69 = scmp.eq.s32.totalorder %s22, 0
      %p70 = por %p68, %p69
      %s72 = sadd.s32 %s71, 1
      %p75 = scmp.eq.s32.totalorder %s16, 1
      %p76 = scmp.ne.s32.totalorder %s71, %s73
      %p77 = scmp.eq.s32.totalorder %s16, 0
      %p78 = por %p76, %p77
      %p79 = scmp.ne.s32.totalorder %s71, %s73
      %p80 = scmp.eq.s32.totalorder %s21, 1
      %p81 = por %p79, %p80
      %p82 = scmp.ne.s32.totalorder %s73, %s74
      %p83 = scmp.eq.s32.totalorder %s21, 0
      %p84 = por %p82, %p83
      %p85 = scmp.ne.s32.totalorder %s73, %s74
      %p86 = scmp.eq.s32.totalorder %s22, 1
      %p87 = por %p85, %p86
      %p89 = scmp.ne.s32.totalorder %s74, %s88
      %p90 = scmp.eq.s32.totalorder %s22, 0
      %p91 = por %p89, %p90
      %s92 = ssub.s32 %s16, %s23
      %p93 = scmp.eq.s32.totalorder %s92, 0
      %s95 = sadd.s32 %s94, 1
      %s96 = scalar_select %p93, %s94, %s95
      %p99 = pneg %p93
      %p100 = scmp.eq.s32.totalorder %s16, 1
      %p101 = por %p99, %p100
      %p102 = scmp.ne.s32.totalorder %s94, %s97
      %p103 = scmp.eq.s32.totalorder %s16, 0
      %p104 = por %p102, %p103
      %p105 = scmp.ne.s32.totalorder %s94, %s97
      %p106 = scmp.eq.s32.totalorder %s21, 1
      %p107 = por %p105, %p106
      %p108 = scmp.ne.s32.totalorder %s97, %s98
      %p109 = scmp.eq.s32.totalorder %s21, 0
      %p110 = por %p108, %p109
      %p111 = scmp.ne.s32.totalorder %s97, %s98
      %p112 = scmp.eq.s32.totalorder %s22, 1
      %p113 = por %p111, %p112
      %p115 = scmp.ne.s32.totalorder %s98, %s114
      %p116 = scmp.eq.s32.totalorder %s22, 0
      %p117 = por %p115, %p116
      %p118 = scmp.le.s32.totalorder 1, %s16
      %p119 = scmp.lt.s32.totalorder %s16, 3
      %p120 = pnand %p118, %p119
      %p121 = pneg %p120
      // Predicated region
      $region9: #{tpu_custom_call.1} parent=5 // pred_check
        _
      $region10: #{tpu_custom_call.1} parent=5 // pred_check_branch
        %123 = sbr.rel (%p120) target = $region12
      $region11: #{tpu_custom_call.1} parent=5 // pred_region
        %s124 = ssub.s32 %s16, 1
        // Predicated region
        $region13: #{tpu_custom_call.1} parent=11 // pred_check
          %p125 = pneg %p63
        $region14: #{tpu_custom_call.1} parent=11 // pred_check_branch
          %127 = sbr.rel (%p125) target = $region16
        $region15: #{tpu_custom_call.1} parent=11 // pred_region
          %s129 = ssub.s32 1024, 1024
          %130 = vsyncadd [#allocation6], %s129
          %s131 = sshll.u32 [#allocation5], 4
          %s132 = int_to_ptr.vmem [resolvable:$true] %s131
          %137 = dma.hbm_to_vmem [thread:$0]  %s1, 1024, %s132, [#allocation6], 64, 64, 4
        $region16: #{tpu_custom_call.1} parent=11 // pred_fallthru
          _
        // Predicated region
        $region17: #{tpu_custom_call.1} parent=11 // pred_check
          %p138 = pneg %p84
        $region18: #{tpu_custom_call.1} parent=11 // pred_check_branch
          %140 = sbr.rel (%p138) target = $region20
        $region19: #{tpu_custom_call.1} parent=11 // pred_region
          _
        $region20: #{tpu_custom_call.1} parent=11 // pred_fallthru
          _
      $region12: #{tpu_custom_call.1} parent=5 // pred_fallthru
        _
      %p141 = scmp.lt.s32.totalorder %s16, 2
      // Predicated region
      $region21: #{tpu_custom_call.1} parent=5 // pred_check
        %p142 = pneg %p141
      $region22: #{tpu_custom_call.1} parent=5 // pred_check_branch
        %144 = sbr.rel (%p142) target = $region24
      $region23: #{tpu_custom_call.1} parent=5 // pred_region
        // Predicated region
        $region25: #{tpu_custom_call.1} parent=23 // pred_check
          %p145 = pneg %p36
        $region26: #{tpu_custom_call.1} parent=23 // pred_check_branch
          %147 = sbr.rel (%p145) target = $region28
        $region27: #{tpu_custom_call.1} parent=23 // pred_region
          %s148 = sand.u32 %s26, 1
          %s149 = scalar_lea.sflag [#allocation3], %s148
          %s150 = sand.u32 %s26, 1
          %s151 = smul.addr %s150, 128
          %s152 = scalar_lea.vmem [#allocation2], %s151
          %s153 = smul.u32 16, %s16
          %s155 = ssub.s32 2048, 2048
          %156 = vsyncadd %s149, %s155
          %s157 = smul.addr %s153, 128
          %s158 = scalar_lea.hbm %s0, %s157
          %s159 = sshll.u32 %s152, 4
          %s160 = int_to_ptr.vmem [resolvable:$true] %s159
          %165 = dma.hbm_to_vmem [thread:$0]  %s158, 2048, %s160, %s149, 128, 128, 8
        $region28: #{tpu_custom_call.1} parent=23 // pred_fallthru
          _
      $region24: #{tpu_custom_call.1} parent=5 // pred_fallthru
        _
      %p166 = scmp.le.s32.totalorder 1, %s16
      %p167 = scmp.lt.s32.totalorder %s16, 3
      %p168 = pnand %p166, %p167
      %p169 = pneg %p168
      // Predicated region
      $region29: #{tpu_custom_call.1} parent=5 // pred_check
        _
      $region30: #{tpu_custom_call.1} parent=5 // pred_check_branch
        %171 = sbr.rel (%p168) target = $region32
      $region31: #{tpu_custom_call.1} parent=5 // pred_region
        %s172 = ssub.s32 %s16, 1
        %s173 = sand.u32 %s29, 1
        %s174 = scalar_lea.sflag [#allocation3], %s173
        %s175 = sand.u32 %s29, 1
        %s176 = smul.addr %s175, 128
        %s177 = scalar_lea.vmem [#allocation2], %s176
        // Predicated region
        $region33: #{tpu_custom_call.1} parent=31 // pred_check
          %p178 = pneg %p42
        $region34: #{tpu_custom_call.1} parent=31 // pred_check_branch
          %180 = sbr.rel (%p178) target = $region36
        $region35: #{tpu_custom_call.1} parent=31 // pred_region
          %181 = dma.done %s174, 2048
        $region36: #{tpu_custom_call.1} parent=31 // pred_fallthru
          _
        // Predicated region
        $region37: #{tpu_custom_call.1} parent=31 // pred_check
          %p182 = pneg %p63
        $region38: #{tpu_custom_call.1} parent=31 // pred_check_branch
          %184 = sbr.rel (%p182) target = $region40
        $region39: #{tpu_custom_call.1} parent=31 // pred_region
          %185 = dma.done [#allocation6], 1024
        $region40: #{tpu_custom_call.1} parent=31 // pred_fallthru
          _
        %s186 = sand.u32 %s29, 1
        %s187 = scalar_lea.sflag [#allocation3], %s186
        %s188 = sand.u32 %s29, 1
        %s189 = smul.addr %s188, 128
        %s190 = scalar_lea.vmem [#allocation2], %s189
        %p191 = pneg %p42
        %p192 = pneg %p39
        %p193 = pneg %p63
        %p194 = pneg %p60
        %p195 = pneg %p84
        %p196 = pneg %p81
        %p197 = pneg %p110
        %p198 = pneg %p107
        %s199 = sand.u32 %s97, 1
        %s200 = scalar_lea.sflag [#allocation4], %s199
        %s201 = sand.u32 %s97, 1
        %s202 = smul.addr %s201, 128
        %s203 = scalar_lea.vmem [#allocation7], %s202
        %s204 = smul.u32 16, %s21
        %s205 = smul.u32 16, %s21
        %v207 = vld [vmem:[%s177] sm:$0xff]
        %v208 = vld [vmem:[%s177 + $0x8] sm:$0xff]
        %v209 = vld [vmem:[%s177 + $0x10] sm:$0xff]
        %v210 = vld [vmem:[%s177 + $0x18] sm:$0xff]
        %v211 = vld [vmem:[%s177 + $0x20] sm:$0xff]
        %v212 = vld [vmem:[%s177 + $0x28] sm:$0xff]
        %v213 = vld [vmem:[%s177 + $0x30] sm:$0xff]
        %v214 = vld [vmem:[%s177 + $0x38] sm:$0xff]
        %v215 = vld [vmem:[%s177 + $0x40] sm:$0xff]
        %v216 = vld [vmem:[%s177 + $0x48] sm:$0xff]
        %v217 = vld [vmem:[%s177 + $0x50] sm:$0xff]
        %v218 = vld [vmem:[%s177 + $0x58] sm:$0xff]
        %v219 = vld [vmem:[%s177 + $0x60] sm:$0xff]
        %v220 = vld [vmem:[%s177 + $0x68] sm:$0xff]
        %v221 = vld [vmem:[%s177 + $0x70] sm:$0xff]
        %v222 = vld [vmem:[%s177 + $0x78] sm:$0xff]
        %v223 = vpack.c.bf16 %v208, %v207
        %v224 = vpack.c.bf16 %v210, %v209
        %v225 = vpack.c.bf16 %v212, %v211
        %v226 = vpack.c.bf16 %v214, %v213
        %v227 = vpack.c.bf16 %v216, %v215
        %v228 = vpack.c.bf16 %v218, %v217
        %v229 = vpack.c.bf16 %v220, %v219
        %v230 = vpack.c.bf16 %v222, %v221
        %v231 = vld [vmem:[#allocation5] sm:$0xf]
        %v232 = vld [vmem:[#allocation5 + $0x4] sm:$0xf]
        %v233 = vld [vmem:[#allocation5 + $0x8] sm:$0xf]
        %v234 = vld [vmem:[#allocation5 + $0xc] sm:$0xf]
        %v235 = vld [vmem:[#allocation5 + $0x10] sm:$0xf]
        %v236 = vld [vmem:[#allocation5 + $0x14] sm:$0xf]
        %v237 = vld [vmem:[#allocation5 + $0x18] sm:$0xf]
        %v238 = vld [vmem:[#allocation5 + $0x1c] sm:$0xf]
        %v239 = vld [vmem:[#allocation5 + $0x20] sm:$0xf]
        %v240 = vld [vmem:[#allocation5 + $0x24] sm:$0xf]
        %v241 = vld [vmem:[#allocation5 + $0x28] sm:$0xf]
        %v242 = vld [vmem:[#allocation5 + $0x2c] sm:$0xf]
        %v243 = vld [vmem:[#allocation5 + $0x30] sm:$0xf]
        %v244 = vld [vmem:[#allocation5 + $0x34] sm:$0xf]
        %v245 = vld [vmem:[#allocation5 + $0x38] sm:$0xf]
        %v246 = vld [vmem:[#allocation5 + $0x3c] sm:$0xf]
        %v247 = vld [vmem:[%s2] sm:$0x1]
        %v249 = vlaneseq
        %v250 = vshrl.u32 %v249, 7
        %v251 = vsub.s32 0, %v250
        %v252 = vrot.slane %v247, %v251
        %v270 = vunpack.c.l.b16 %v231
        %v271 = vunpack.c.l.b16 %v232
        %v272 = vunpack.c.l.b16 %v233
        %v273 = vunpack.c.l.b16 %v234
        %v274 = vunpack.c.l.b16 %v235
        %v275 = vunpack.c.l.b16 %v236
        %v276 = vunpack.c.l.b16 %v237
        %v277 = vunpack.c.l.b16 %v238
        %v278 = vunpack.c.l.b16 %v239
        %v279 = vunpack.c.l.b16 %v240
        %v280 = vunpack.c.l.b16 %v241
        %v281 = vunpack.c.l.b16 %v242
        %v282 = vunpack.c.l.b16 %v243
        %v283 = vunpack.c.l.b16 %v244
        %v284 = vunpack.c.l.b16 %v245
        %v285 = vunpack.c.l.b16 %v246
        %v286 = vpack.c.b16 %v271, %v270
        %v287 = vpack.c.b16 %v273, %v272
        %v288 = vpack.c.b16 %v275, %v274
        %v289 = vpack.c.b16 %v277, %v276
        %v290 = vpack.c.b16 %v279, %v278
        %v291 = vpack.c.b16 %v281, %v280
        %v292 = vpack.c.b16 %v283, %v282
        %v293 = vpack.c.b16 %v285, %v284
        %302 = vmatprep.subr.bf16.mxu0 0
        %303 = vmatpush1.bf16.msra.mxu0 %v286
        %304 = vmatprep.subr.bf16.mxu0 0
        %305 = vmatpush1.bf16.msra.mxu0 %v287
        %306 = vmatprep.subr.bf16.mxu0 0
        %307 = vmatpush1.bf16.msra.mxu0 %v288
        %308 = vmatprep.subr.bf16.mxu0 0
        %309 = vmatpush1.bf16.msra.mxu0 %v289
        %310 = vmatprep.subr.bf16.mxu0 0
        %311 = vmatpush1.bf16.msra.mxu0 %v290
        %312 = vmatprep.subr.bf16.mxu0 0
        %313 = vmatpush1.bf16.msra.mxu0 %v291
        %314 = vmatprep.subr.bf16.mxu0 0
        %315 = vmatpush1.bf16.msra.mxu0 %v292
        %316 = vmatprep.subr.bf16.mxu0 0
        %317 = vmatpush1.bf16.msra.mxu0 %v293
        %318 = vmatprep.subr.bf16.mxu0 0
        %319 = vmatpush1.bf16.msra.mxu0 0
        %320 = vmatprep.subr.bf16.mxu0 0
        %321 = vmatpush1.bf16.msra.mxu0 0
        %322 = vmatprep.subr.bf16.mxu0 0
        %323 = vmatpush1.bf16.msra.mxu0 0
        %324 = vmatprep.subr.bf16.mxu0 0
        %325 = vmatpush1.bf16.msra.mxu0 0
        %326 = vmatprep.subr.bf16.mxu0 0
        %327 = vmatpush1.bf16.msra.mxu0 0
        %328 = vmatprep.subr.bf16.mxu0 0
        %329 = vmatpush1.bf16.msra.mxu0 0
        %330 = vmatprep.subr.bf16.mxu0 0
        %331 = vmatpush1.bf16.msra.mxu0 0
        %332 = vmatprep.subr.bf16.mxu0 0
        %333 = vmatpush1.bf16.msra.mxu0 0
        %334 = vmatprep.mubr.bf16.mxu0 0
        %335 = vmatmul.mubr.bf16.gmra.mrb[0].mxu0 %v223
        %v336 = vpop.f32.mrb[0].mxu0
        %v337 = vadd.f32 %v252, %v336
        %v338 = vpop.f32.mrb[0].mxu0
        %v339 = vpop.f32.mrb[0].mxu0
        %v340 = vadd.f32 %v252, %v339
        %v341 = vpop.f32.mrb[0].mxu0
        %342 = vmatprep.mubr.bf16.mxu0 0
        %343 = vmatmul.mubr.bf16.gmra.mrb[0].mxu0 %v224
        %v344 = vpop.f32.mrb[0].mxu0
        %v345 = vadd.f32 %v252, %v344
        %v346 = vpop.f32.mrb[0].mxu0
        %v347 = vpop.f32.mrb[0].mxu0
        %v348 = vadd.f32 %v252, %v347
        %v349 = vpop.f32.mrb[0].mxu0
        %350 = vmatprep.mubr.bf16.mxu0 0
        %351 = vmatmul.mubr.bf16.gmra.mrb[0].mxu0 %v225
        %v352 = vpop.f32.mrb[0].mxu0
        %v353 = vadd.f32 %v252, %v352
        %v354 = vpop.f32.mrb[0].mxu0
        %v355 = vpop.f32.mrb[0].mxu0
        %v356 = vadd.f32 %v252, %v355
        %v357 = vpop.f32.mrb[0].mxu0
        %358 = vmatprep.mubr.bf16.mxu0 0
        %359 = vmatmul.mubr.bf16.gmra.mrb[0].mxu0 %v226
        %v360 = vpop.f32.mrb[0].mxu0
        %v361 = vadd.f32 %v252, %v360
        %v362 = vpop.f32.mrb[0].mxu0
        %v363 = vpop.f32.mrb[0].mxu0
        %v364 = vadd.f32 %v252, %v363
        %v365 = vpop.f32.mrb[0].mxu0
        %366 = vmatprep.mubr.bf16.mxu0 0
        %367 = vmatmul.mubr.bf16.gmra.mrb[0].mxu0 %v227
        %v368 = vpop.f32.mrb[0].mxu0
        %v369 = vadd.f32 %v252, %v368
        %v370 = vpop.f32.mrb[0].mxu0
        %v371 = vpop.f32.mrb[0].mxu0
        %v372 = vadd.f32 %v252, %v371
        %v373 = vpop.f32.mrb[0].mxu0
        %374 = vmatprep.mubr.bf16.mxu0 0
        %375 = vmatmul.mubr.bf16.gmra.mrb[0].mxu0 %v228
        %v376 = vpop.f32.mrb[0].mxu0
        %v377 = vadd.f32 %v252, %v376
        %v378 = vpop.f32.mrb[0].mxu0
        %v379 = vpop.f32.mrb[0].mxu0
        %v380 = vadd.f32 %v252, %v379
        %v381 = vpop.f32.mrb[0].mxu0
        %382 = vmatprep.mubr.bf16.mxu0 0
        %383 = vmatmul.mubr.bf16.gmra.mrb[0].mxu0 %v229
        %v384 = vpop.f32.mrb[0].mxu0
        %v385 = vadd.f32 %v252, %v384
        %v386 = vpop.f32.mrb[0].mxu0
        %v387 = vpop.f32.mrb[0].mxu0
        %v388 = vadd.f32 %v252, %v387
        %v389 = vpop.f32.mrb[0].mxu0
        %390 = vmatprep.mubr.bf16.mxu0 0
        %391 = vmatmul.mubr.bf16.gmra.mrb[0].mxu0 %v230
        %v392 = vpop.f32.mrb[0].mxu0
        %v393 = vadd.f32 %v252, %v392
        %v394 = vpop.f32.mrb[0].mxu0
        %v395 = vpop.f32.mrb[0].mxu0
        %v396 = vadd.f32 %v252, %v395
        %v397 = vpop.f32.mrb[0].mxu0
        %398 = vdwg.mxu0
        %v399 = vadd.f32 %v207, %v337
        %v400 = vadd.f32 %v208, %v340
        %v401 = vadd.f32 %v209, %v345
        %v402 = vadd.f32 %v210, %v348
        %v403 = vadd.f32 %v211, %v353
        %v404 = vadd.f32 %v212, %v356
        %v405 = vadd.f32 %v213, %v361
        %v406 = vadd.f32 %v214, %v364
        %v407 = vadd.f32 %v215, %v369
        %v408 = vadd.f32 %v216, %v372
        %v409 = vadd.f32 %v217, %v377
        %v410 = vadd.f32 %v218, %v380
        %v411 = vadd.f32 %v219, %v385
        %v412 = vadd.f32 %v220, %v388
        %v413 = vadd.f32 %v221, %v393
        %v414 = vadd.f32 %v222, %v396
        %415 = vst [vmem:[%s203] sm:$0xff] %v399
        %416 = vst [vmem:[%s203 + $0x8] sm:$0xff] %v400
        %417 = vst [vmem:[%s203 + $0x10] sm:$0xff] %v401
        %418 = vst [vmem:[%s203 + $0x18] sm:$0xff] %v402
        %419 = vst [vmem:[%s203 + $0x20] sm:$0xff] %v403
        %420 = vst [vmem:[%s203 + $0x28] sm:$0xff] %v404
        %421 = vst [vmem:[%s203 + $0x30] sm:$0xff] %v405
        %422 = vst [vmem:[%s203 + $0x38] sm:$0xff] %v406
        %423 = vst [vmem:[%s203 + $0x40] sm:$0xff] %v407
        %424 = vst [vmem:[%s203 + $0x48] sm:$0xff] %v408
        %425 = vst [vmem:[%s203 + $0x50] sm:$0xff] %v409
        %426 = vst [vmem:[%s203 + $0x58] sm:$0xff] %v410
        %427 = vst [vmem:[%s203 + $0x60] sm:$0xff] %v411
        %428 = vst [vmem:[%s203 + $0x68] sm:$0xff] %v412
        %429 = vst [vmem:[%s203 + $0x70] sm:$0xff] %v413
        %430 = vst [vmem:[%s203 + $0x78] sm:$0xff] %v414
        %s431 = sand.u32 %s97, 1
        %s432 = scalar_lea.sflag [#allocation4], %s431
        %s433 = sand.u32 %s97, 1
        %s434 = smul.addr %s433, 128
        %s435 = scalar_lea.vmem [#allocation7], %s434
        // Predicated region
        $region41: #{tpu_custom_call.1} parent=31 // pred_check
          %p436 = pneg %p107
        $region42: #{tpu_custom_call.1} parent=31 // pred_check_branch
          %438 = sbr.rel (%p436) target = $region44
        $region43: #{tpu_custom_call.1} parent=31 // pred_region
          %s439 = smul.u32 16, %s21
          %s441 = ssub.s32 2048, 2048
          %442 = vsyncadd %s432, %s441
          %s443 = smul.addr %s439, 128
          %s444 = scalar_lea.hbm %s3, %s443
          %s445 = sshll.u32 %s435, 4
          %s446 = int_to_ptr.vmem [resolvable:$true] %s445
          %451 = dma.vmem_to_hbm [thread:$0]  %s446, 2048, %s444, %s432, 128, 128, 8
        $region44: #{tpu_custom_call.1} parent=31 // pred_fallthru
          _
      $region32: #{tpu_custom_call.1} parent=5 // pred_fallthru
        _
      %p452 = scmp.le.s32.totalorder 2, %s16
      // Predicated region
      $region45: #{tpu_custom_call.1} parent=5 // pred_check
        %p453 = pneg %p452
      $region46: #{tpu_custom_call.1} parent=5 // pred_check_branch
        %455 = sbr.rel (%p453) target = $region48
      $region47: #{tpu_custom_call.1} parent=5 // pred_region
        %s456 = ssub.s32 %s16, 2
        // Predicated region
        $region49: #{tpu_custom_call.1} parent=47 // pred_check
          %p457 = pneg %p113
        $region50: #{tpu_custom_call.1} parent=47 // pred_check_branch
          %459 = sbr.rel (%p457) target = $region52
        $region51: #{tpu_custom_call.1} parent=47 // pred_region
          %s460 = sand.u32 %s98, 1
          %s461 = scalar_lea.sflag [#allocation4], %s460
          %s462 = sand.u32 %s98, 1
          %s463 = smul.addr %s462, 128
          %s464 = scalar_lea.vmem [#allocation7], %s463
          %465 = dma.done %s461, 2048
        $region52: #{tpu_custom_call.1} parent=47 // pred_fallthru
          _
      $region48: #{tpu_custom_call.1} parent=5 // pred_fallthru
        _
    $region6: #{tpu_custom_call.1} parent=1 // loop_footer
      %s20 = sadd.s32 1, %s16
    $region7: #{tpu_custom_call.1} parent=1 // loop_footer_branch
      %15 = sbr.rel target = $region3
    $region8: #{tpu_custom_call.1} parent=1 // loop_exit
      _
    %466 = vsyncpa [#allocation3], 1
    %s467 = scalar_lea.sflag [#allocation3], 1
    %468 = vsyncpa %s467, 1
    %469 = vsyncpa [#allocation6], 1
    %470 = vsyncpa [#allocation4], 1
    %s471 = scalar_lea.sflag [#allocation4], 1
    %472 = vsyncpa %s471, 1

</llo_original>
